<compile_context>
chip_gen: v7x
topology: tpu7x:2x2x1
jax: 0.10.0
libtpu: 0.0.40
codegen_flags: <defaults>
</compile_context>

<pallas_src>
import functools

import jax
import jax.numpy as jnp
from jax.experimental import pallas as pl
from jax.experimental.pallas import tpu as pltpu


def _round_up(a, b):
    return (a + b - 1) // b * b


def _pick_tile(total, requested, align):
    """Largest multiple of `align` that divides `total` and is <= requested."""
    t = min(requested, total)
    t = max(align, (t // align) * align)
    while total % t != 0:
        t -= align
        if t < align:
            return total
    return t


def ffn_kernel(x_ref, w1_ref, b1_ref, w2_ref, b2_ref, g_ref, beta_ref,
               o_ref, acc_ref):
    # x_ref: (tm, D) f32;  w1_ref: (D, tf) bf16;  b1_ref: (1, tf) f32
    # w2_ref: (tf, D) bf16;  b2/g/beta: (1, D) f32;  acc_ref: (tm, D) f32
    f = pl.program_id(1)
    last = pl.num_programs(1) - 1

    x = x_ref[...]                       # f32, reused for the residual
    xb = x.astype(jnp.bfloat16)          # bf16 MXU operand only

    # linear1 (this F-slice) + dropout(eval: identity) + ReLU, f32 epilogue.
    h = jnp.dot(xb, w1_ref[...], preferred_element_type=jnp.float32)
    h = jnp.maximum(h + b1_ref[...], 0.0)

    # linear2 partial contribution for this F-slice.
    partial = jnp.dot(h.astype(jnp.bfloat16), w2_ref[...],
                      preferred_element_type=jnp.float32)

    @pl.when(f == 0)
    def _():
        acc_ref[...] = partial           # first slice: overwrite (no zero-init)

    @pl.when(f != 0)
    def _():
        acc_ref[...] += partial

    @pl.when(f == last)
    def _():
        # bias2 + residual + LayerNorm (eps=1e-5, PyTorch default), all f32.
        y = acc_ref[...] + b2_ref[...] + x
        mean = jnp.mean(y, axis=-1, keepdims=True)
        var = jnp.mean(jnp.square(y - mean), axis=-1, keepdims=True)
        y_n = (y - mean) * jax.lax.rsqrt(var + 1e-5)
        o_ref[...] = (y_n * g_ref[...] + beta_ref[...]).astype(o_ref.dtype)


@functools.partial(jax.jit, static_argnames=("tm", "tf"))
def feed_forward(x, w1_t, b1, w2_t, b2, gamma, beta, *, tm=256, tf=512):
    """x: (B, S, d_model) float32.  Returns (B, S, d_model)."""
    B, S, D = x.shape
    F = w1_t.shape[1]
    M = B * S

    # Clamp tiles to the problem size (keeps tiny demo shapes from over-padding).
    tm = max(8, min(tm, _round_up(M, 8)))
    tf = _pick_tile(F, tf, 128)

    M_pad = _round_up(M, tm)
    x2 = x.reshape(M, D)
    if M_pad != M:
        x2 = jnp.pad(x2, ((0, M_pad - M), (0, 0)))

    grid = (M_pad // tm, F // tf)

    out2 = pl.pallas_call(
        ffn_kernel,
        out_shape=jax.ShapeDtypeStruct((M_pad, D), x.dtype),
        grid_spec=pltpu.PrefetchScalarGridSpec(
            num_scalar_prefetch=0,
            grid=grid,
            in_specs=[
                pl.BlockSpec((tm, D), lambda i, f: (i, 0)),   # x rows (resident over f)
                pl.BlockSpec((D, tf), lambda i, f: (0, f)),   # W1^T slice (bf16)
                pl.BlockSpec((1, tf), lambda i, f: (0, f)),   # b1 slice
                pl.BlockSpec((tf, D), lambda i, f: (f, 0)),   # W2^T slice (bf16)
                pl.BlockSpec((1, D), lambda i, f: (0, 0)),    # b2
                pl.BlockSpec((1, D), lambda i, f: (0, 0)),    # gamma
                pl.BlockSpec((1, D), lambda i, f: (0, 0)),    # beta
            ],
            out_specs=pl.BlockSpec((tm, D), lambda i, f: (i, 0)),
            scratch_shapes=[pltpu.VMEM((tm, D), jnp.float32)],
        ),
        compiler_params=pltpu.CompilerParams(
            dimension_semantics=("parallel", "arbitrary"),
            vmem_limit_bytes=48 * 1024 * 1024,
        ),
    )(x2, w1_t, b1, w2_t, b2, gamma, beta)

    return out2[:M].reshape(B, S, D)


def init_params(key, d_model, feed_dim):
    """Deterministic init mimicking nn.Linear / nn.LayerNorm shapes."""
    k1, k2, k3, k4 = jax.random.split(key, 4)
    lim1 = 1.0 / (d_model ** 0.5)
    lim2 = 1.0 / (feed_dim ** 0.5)
    # PyTorch Linear weight shapes: (out, in). Store transposed, bf16 for MXU.
    w1 = jax.random.uniform(k1, (feed_dim, d_model), jnp.float32, -lim1, lim1)
    b1 = jax.random.uniform(k2, (feed_dim,), jnp.float32, -lim1, lim1)
    w2 = jax.random.uniform(k3, (d_model, feed_dim), jnp.float32, -lim2, lim2)
    b2 = jax.random.uniform(k4, (d_model,), jnp.float32, -lim2, lim2)
    gamma = jnp.ones((d_model,), jnp.float32)
    beta = jnp.zeros((d_model,), jnp.float32)
    return (w1.T.astype(jnp.bfloat16), b1.reshape(1, -1),
            w2.T.astype(jnp.bfloat16), b2.reshape(1, -1),
            gamma.reshape(1, -1), beta.reshape(1, -1))


def feed_forward_ref(x, w1_t, b1, w2_t, b2, gamma, beta):
    """Pure-JAX reference (same bf16-operand / f32-accumulate recipe)."""
    h = jnp.dot(x.astype(jnp.bfloat16), w1_t,
                preferred_element_type=jnp.float32) + b1[0]
    h = jnp.maximum(h, 0.0)
    y = jnp.dot(h.astype(jnp.bfloat16), w2_t,
                preferred_element_type=jnp.float32) + b2[0] + x
    mean = jnp.mean(y, axis=-1, keepdims=True)
    var = jnp.mean(jnp.square(y - mean), axis=-1, keepdims=True)
    return (y - mean) * jax.lax.rsqrt(var + 1e-5) * gamma[0] + beta[0]


if __name__ == "__main__":
    # Small but lane-dense demo shapes (d_model, feed_dim multiples of 128).
    B, S, d_model, feed_dim = 2, 8, 128, 256

    key = jax.random.PRNGKey(0)
    kx, kp = jax.random.split(key)
    x = jax.random.normal(kx, (B, S, d_model), dtype=jnp.float32)
    params = init_params(kp, d_model, feed_dim)

    out = feed_forward(x, *params)
    out = jax.block_until_ready(out)

    ref = feed_forward_ref(x, *params)
    assert out.shape == (B, S, d_model)
    assert jnp.allclose(out, ref, atol=1e-3, rtol=1e-3), "mismatch vs reference"

    print("KERNEL_OK")
</pallas_src>

<mosaic_0001>
module attributes {stable_mosaic.version = 11 : i64} {
  func.func @ffn_kernel(%arg0: i32, %arg1: i32, %arg2: memref<16x128xf32, #tpu.memory_space<vmem>>, %arg3: memref<128x256xbf16, #tpu.memory_space<vmem>>, %arg4: memref<1x256xf32, #tpu.memory_space<vmem>>, %arg5: memref<256x128xbf16, #tpu.memory_space<vmem>>, %arg6: memref<1x128xf32, #tpu.memory_space<vmem>>, %arg7: memref<1x128xf32, #tpu.memory_space<vmem>>, %arg8: memref<1x128xf32, #tpu.memory_space<vmem>>, %arg9: memref<16x128xf32, #tpu.memory_space<vmem>>, %arg10: memref<16x128xf32, #tpu.memory_space<vmem>>) attributes {dimension_semantics = [#tpu.dimension_semantics<parallel>, #tpu.dimension_semantics<arbitrary>], iteration_bounds = array<i64: 1, 1>, scalar_prefetch = 0 : i64, scratch_operands = 1 : i64, tpu.core_type = #tpu.core_type<tc>, window_params = [{transform_indices = @transform_0, window_bounds = array<i64: 16, 128>}, {transform_indices = @transform_1, window_bounds = array<i64: 128, 256>}, {transform_indices = @transform_2, window_bounds = array<i64: 1, 256>}, {transform_indices = @transform_3, window_bounds = array<i64: 256, 128>}, {pipeline_mode = #tpu.pipeline_mode<synchronous>, transform_indices = @transform_4, window_bounds = array<i64: 1, 128>}, {pipeline_mode = #tpu.pipeline_mode<synchronous>, transform_indices = @transform_5, window_bounds = array<i64: 1, 128>}, {pipeline_mode = #tpu.pipeline_mode<synchronous>, transform_indices = @transform_6, window_bounds = array<i64: 1, 128>}, {transform_indices = @transform_7, window_bounds = array<i64: 16, 128>}]} {
    %c0 = arith.constant 0 : index
    %c0_0 = arith.constant 0 : index
    %0 = vector.load %arg2[%c0, %c0_0] : memref<16x128xf32, #tpu.memory_space<vmem>>, vector<16x128xf32>
    %1 = arith.truncf %0 : vector<16x128xf32> to vector<16x128xbf16>
    %c0_1 = arith.constant 0 : index
    %c0_2 = arith.constant 0 : index
    %2 = vector.load %arg3[%c0_1, %c0_2] : memref<128x256xbf16, #tpu.memory_space<vmem>>, vector<128x256xbf16>
    %cst = arith.constant dense<0.000000e+00> : vector<16x256xf32>
    %3 = tpu.matmul %1, %2, %cst {dimension_numbers = #tpu.dot_dimension_numbers<[1], [0], [0], [1], [0, 0, 1, 1], [], []>} : vector<16x128xbf16>, vector<128x256xbf16>, vector<16x256xf32> -> vector<16x256xf32>
    %c0_3 = arith.constant 0 : index
    %c0_4 = arith.constant 0 : index
    %4 = vector.load %arg4[%c0_3, %c0_4] : memref<1x256xf32, #tpu.memory_space<vmem>>, vector<1x256xf32>
    %5 = vector.broadcast %4 : vector<1x256xf32> to vector<16x256xf32>
    %6 = arith.addf %3, %5 : vector<16x256xf32>
    %cst_5 = arith.constant 0.000000e+00 : f32
    %7 = vector.broadcast %cst_5 : f32 to vector<16x256xf32>
    %8 = arith.maximumf %6, %7 : vector<16x256xf32>
    %9 = arith.truncf %8 : vector<16x256xf32> to vector<16x256xbf16>
    %c0_6 = arith.constant 0 : index
    %c0_7 = arith.constant 0 : index
    %10 = vector.load %arg5[%c0_6, %c0_7] : memref<256x128xbf16, #tpu.memory_space<vmem>>, vector<256x128xbf16>
    %cst_8 = arith.constant dense<0.000000e+00> : vector<16x128xf32>
    %11 = tpu.matmul %9, %10, %cst_8 {dimension_numbers = #tpu.dot_dimension_numbers<[1], [0], [0], [1], [0, 0, 1, 1], [], []>} : vector<16x256xbf16>, vector<256x128xbf16>, vector<16x128xf32> -> vector<16x128xf32>
    %c0_i32 = arith.constant 0 : i32
    %12 = arith.cmpi eq, %arg1, %c0_i32 : i32
    %13 = arith.extui %12 : i1 to i32
    %c0_i32_9 = arith.constant 0 : i32
    %14 = arith.cmpi ne, %13, %c0_i32_9 : i32
    scf.if %14 {
      %c0_14 = arith.constant 0 : index
      %c0_15 = arith.constant 0 : index
      %21 = vector.load %arg10[%c0_14, %c0_15] : memref<16x128xf32, #tpu.memory_space<vmem>>, vector<16x128xf32>
      tpu.vector_store %arg10[%c0_14, %c0_15], %11 {strides = array<i32>} : memref<16x128xf32, #tpu.memory_space<vmem>>, vector<16x128xf32>,
    } else {
    }
    %c0_i32_10 = arith.constant 0 : i32
    %15 = arith.cmpi ne, %arg1, %c0_i32_10 : i32
    %16 = arith.extui %15 : i1 to i32
    %c0_i32_11 = arith.constant 0 : i32
    %17 = arith.cmpi ne, %16, %c0_i32_11 : i32
    scf.if %17 {
      %c0_14 = arith.constant 0 : index
      %c0_15 = arith.constant 0 : index
      %21 = vector.load %arg10[%c0_14, %c0_15] : memref<16x128xf32, #tpu.memory_space<vmem>>, vector<16x128xf32>
      %22 = arith.addf %21, %11 : vector<16x128xf32>
      %c0_16 = arith.constant 0 : index
      %c0_17 = arith.constant 0 : index
      %23 = vector.load %arg10[%c0_16, %c0_17] : memref<16x128xf32, #tpu.memory_space<vmem>>, vector<16x128xf32>
      tpu.vector_store %arg10[%c0_16, %c0_17], %22 {strides = array<i32>} : memref<16x128xf32, #tpu.memory_space<vmem>>, vector<16x128xf32>,
    } else {
    }
    %c0_i32_12 = arith.constant 0 : i32
    %18 = arith.cmpi eq, %arg1, %c0_i32_12 : i32
    %19 = arith.extui %18 : i1 to i32
    %c0_i32_13 = arith.constant 0 : i32
    %20 = arith.cmpi ne, %19, %c0_i32_13 : i32
    scf.if %20 {
      %c0_14 = arith.constant 0 : index
      %c0_15 = arith.constant 0 : index
      %21 = vector.load %arg10[%c0_14, %c0_15] : memref<16x128xf32, #tpu.memory_space<vmem>>, vector<16x128xf32>
      %c0_16 = arith.constant 0 : index
      %c0_17 = arith.constant 0 : index
      %22 = vector.load %arg6[%c0_16, %c0_17] : memref<1x128xf32, #tpu.memory_space<vmem>>, vector<1x128xf32>
      %23 = vector.broadcast %22 : vector<1x128xf32> to vector<16x128xf32>
      %24 = arith.addf %21, %23 : vector<16x128xf32>
      %25 = arith.addf %24, %0 : vector<16x128xf32>
      %cst_18 = arith.constant dense<0.000000e+00> : vector<16xf32>
      %26 = vector.multi_reduction <add>, %25, %cst_18 [1] : vector<16x128xf32> to vector<16xf32>
      %27 = vector.shape_cast %26 : vector<16xf32> to vector<16x1xf32>
      %cst_19 = arith.constant 1.280000e+02 : f32
      %28 = vector.broadcast %cst_19 : f32 to vector<16x1xf32>
      %29 = arith.divf %27, %28 : vector<16x1xf32>
      %30 = vector.broadcast %29 : vector<16x1xf32> to vector<16x128xf32>
      %31 = arith.subf %25, %30 : vector<16x128xf32>
      %32 = arith.mulf %31, %31 : vector<16x128xf32>
      %cst_20 = arith.constant dense<0.000000e+00> : vector<16xf32>
      %33 = vector.multi_reduction <add>, %32, %cst_20 [1] : vector<16x128xf32> to vector<16xf32>
      %34 = vector.shape_cast %33 : vector<16xf32> to vector<16x1xf32>
      %cst_21 = arith.constant 1.280000e+02 : f32
      %35 = vector.broadcast %cst_21 : f32 to vector<16x1xf32>
      %36 = arith.divf %34, %35 : vector<16x1xf32>
      %37 = vector.broadcast %29 : vector<16x1xf32> to vector<16x128xf32>
      %38 = arith.subf %25, %37 : vector<16x128xf32>
      %cst_22 = arith.constant 9.99999974E-6 : f32
      %39 = vector.broadcast %cst_22 : f32 to vector<16x1xf32>
      %40 = arith.addf %36, %39 : vector<16x1xf32>
      %41 = math.rsqrt %40 : vector<16x1xf32>
      %42 = vector.broadcast %41 : vector<16x1xf32> to vector<16x128xf32>
      %43 = arith.mulf %38, %42 : vector<16x128xf32>
      %c0_23 = arith.constant 0 : index
      %c0_24 = arith.constant 0 : index
      %44 = vector.load %arg7[%c0_23, %c0_24] : memref<1x128xf32, #tpu.memory_space<vmem>>, vector<1x128xf32>
      %45 = vector.broadcast %44 : vector<1x128xf32> to vector<16x128xf32>
      %46 = arith.mulf %43, %45 : vector<16x128xf32>
      %c0_25 = arith.constant 0 : index
      %c0_26 = arith.constant 0 : index
      %47 = vector.load %arg8[%c0_25, %c0_26] : memref<1x128xf32, #tpu.memory_space<vmem>>, vector<1x128xf32>
      %48 = vector.broadcast %47 : vector<1x128xf32> to vector<16x128xf32>
      %49 = arith.addf %46, %48 : vector<16x128xf32>
      %c0_27 = arith.constant 0 : index
      %c0_28 = arith.constant 0 : index
      %50 = vector.load %arg9[%c0_27, %c0_28] : memref<16x128xf32, #tpu.memory_space<vmem>>, vector<16x128xf32>
      tpu.vector_store %arg9[%c0_27, %c0_28], %49 {strides = array<i32>} : memref<16x128xf32, #tpu.memory_space<vmem>>, vector<16x128xf32>,
    } else {
    }
    return
  }
  func.func @transform_0(%arg0: i32, %arg1: i32) -> (i32, i32) {
    %c0_i32 = arith.constant 0 : i32
    %c0_i32_0 = arith.constant 0 : i32
    return %arg0, %c0_i32 : i32, i32
  }
  func.func @transform_1(%arg0: i32, %arg1: i32) -> (i32, i32) {
    %c0_i32 = arith.constant 0 : i32
    %c0_i32_0 = arith.constant 0 : i32
    return %c0_i32, %arg1 : i32, i32
  }
  func.func @transform_2(%arg0: i32, %arg1: i32) -> (i32, i32) {
    %c0_i32 = arith.constant 0 : i32
    %c0_i32_0 = arith.constant 0 : i32
    return %c0_i32, %arg1 : i32, i32
  }
  func.func @transform_3(%arg0: i32, %arg1: i32) -> (i32, i32) {
    %c0_i32 = arith.constant 0 : i32
    %c0_i32_0 = arith.constant 0 : i32
    return %arg1, %c0_i32 : i32, i32
  }
  func.func @transform_4(%arg0: i32, %arg1: i32) -> (i32, i32) {
    %c0_i32 = arith.constant 0 : i32
    %c0_i32_0 = arith.constant 0 : i32
    %c0_i32_1 = arith.constant 0 : i32
    return %c0_i32, %c0_i32_0 : i32, i32
  }
  func.func @transform_5(%arg0: i32, %arg1: i32) -> (i32, i32) {
    %c0_i32 = arith.constant 0 : i32
    %c0_i32_0 = arith.constant 0 : i32
    %c0_i32_1 = arith.constant 0 : i32
    return %c0_i32, %c0_i32_0 : i32, i32
  }
  func.func @transform_6(%arg0: i32, %arg1: i32) -> (i32, i32) {
    %c0_i32 = arith.constant 0 : i32
    %c0_i32_0 = arith.constant 0 : i32
    %c0_i32_1 = arith.constant 0 : i32
    return %c0_i32, %c0_i32_0 : i32, i32
  }
  func.func @transform_7(%arg0: i32, %arg1: i32) -> (i32, i32) {
    %c0_i32 = arith.constant 0 : i32
    %c0_i32_0 = arith.constant 0 : i32
    return %arg0, %c0_i32 : i32, i32
  }
}

</mosaic_0001>

<llo_original>
// kernel: feed_forward.1
$region0: #{feed_forward.1}
  #allocation0 [shape = 'u32[]', space=smem, size = 0x4, offset = 0x4, fixed_abs, tag = 'smem constant byte address 0x4 - core index']
  #allocation1 [shape = 'u32[144,128]{1,0:T(1,128)}', space=vmem, size = 0x12000, scoped, tag = 'internal scratch']
  #allocation2 [shape = 'f32[16,128]{1,0:T(8,128)}', space=vmem, size = 0x2000, scoped, tag = 'scratch operand']
  %s0 = inlined_call_operand.hbm [shape: f32[16,128], index: 0, kind: input, shape index: {}]
  %s1 = inlined_call_operand.hbm [shape: bf16[128,256], index: 1, kind: input, shape index: {}]
  %s2 = inlined_call_operand.vmem [shape: f32[1,256], index: 2, kind: input, shape index: {}]
  %s3 = inlined_call_operand.hbm [shape: bf16[256,128], index: 3, kind: input, shape index: {}]
  %s4 = inlined_call_operand.vmem [shape: f32[1,128], index: 4, kind: input, shape index: {}]
  %s5 = inlined_call_operand.vmem [shape: f32[1,128], index: 5, kind: input, shape index: {}]
  %s6 = inlined_call_operand.vmem [shape: f32[1,128], index: 6, kind: input, shape index: {}]
  %s7 = inlined_call_operand.hbm [shape: f32[16,128], index: 7, kind: output, shape index: {}]
  %s8 = sld [smem:[#allocation0]]
  $region62: #{feed_forward.1} parent=0
    _
  %s10 = ssub.s32 1, %s8
  %s11 = scalar_select 0, %s10, %s8
  $region1: #{feed_forward.1} parent=0
    #allocation3 [shape = 'u8[8192]{0}', space=vmem, size = 0x2000, scoped, tag = 'input window, operand 0, single buffered']
    #allocation4 [shape = 's32[1]{0}', space=sflag, size = 0x4, scoped, tag = 'scoped memory for feed_forward.1']
    #allocation5 [shape = 's32[1]{0}', space=sflag, size = 0x4, scoped, tag = 'scoped memory for feed_forward.1']
    #allocation6 [shape = 'u8[65536]{0}', space=vmem, size = 0x10000, scoped, tag = 'input window, operand 1, single buffered']
    #allocation7 [shape = 's32[1]{0}', space=sflag, size = 0x4, scoped, tag = 'scoped memory for feed_forward.1']
    #allocation8 [shape = 'u8[65536]{0}', space=vmem, size = 0x10000, scoped, tag = 'input window, operand 3, single buffered']
    #allocation9 [shape = 'u8[8192]{0}', space=vmem, size = 0x2000, scoped, tag = 'output window, operand 0, single buffered']
    %12 = vsyncpa [#allocation4], 0
    %13 = vsyncpa [#allocation7], 0
    %14 = vsyncpa [#allocation5], 0
    // Predicated region
    $region2: #{feed_forward.1} parent=1 // pred_check
      _
    $region3: #{feed_forward.1} parent=1 // pred_check_branch
      %16 = sbr.rel (0) target = $region5
    $region4: #{feed_forward.1} parent=1 // pred_region
      %s18 = ssub.s32 256, 256
      %19 = vsyncadd [#allocation4], %s18
      %s20 = sshll.u32 [#allocation3], 4
      %s21 = int_to_ptr.vmem [resolvable:$true] %s20
      %26 = dma.hbm_to_vmem [thread:$0]  %s0, 256, %s21, [#allocation4], 128, 128, 8
    $region5: #{feed_forward.1} parent=1 // pred_fallthru
      _
    // Predicated region
    $region6: #{feed_forward.1} parent=1 // pred_check
      _
    $region7: #{feed_forward.1} parent=1 // pred_check_branch
      %28 = sbr.rel (0) target = $region9
    $region8: #{feed_forward.1} parent=1 // pred_region
      %s30 = ssub.s32 2048, 2048
      %31 = vsyncadd [#allocation7], %s30
      %s32 = sshll.u32 [#allocation6], 4
      %s33 = int_to_ptr.vmem [resolvable:$true] %s32
      %38 = dma.hbm_to_vmem [thread:$0]  %s1, 2048, %s33, [#allocation7], 128, 128, 8
    $region9: #{feed_forward.1} parent=1 // pred_fallthru
      _
    // Predicated region
    $region10: #{feed_forward.1} parent=1 // pred_check
      _
    $region11: #{feed_forward.1} parent=1 // pred_check_branch
      %40 = sbr.rel (0) target = $region13
    $region12: #{feed_forward.1} parent=1 // pred_region
      _
    $region13: #{feed_forward.1} parent=1 // pred_fallthru
      _
    // Predicated region
    $region14: #{feed_forward.1} parent=1 // pred_check
      _
    $region15: #{feed_forward.1} parent=1 // pred_check_branch
      %42 = sbr.rel (0) target = $region17
    $region16: #{feed_forward.1} parent=1 // pred_region
      %s44 = ssub.s32 2048, 2048
      %45 = vsyncadd [#allocation7], %s44
      %s46 = sshll.u32 [#allocation8], 4
      %s47 = int_to_ptr.vmem [resolvable:$true] %s46
      %52 = dma.hbm_to_vmem [thread:$0]  %s3, 2048, %s47, [#allocation7], 64, 64, 4
    $region17: #{feed_forward.1} parent=1 // pred_fallthru
      _
    // Predicated region
    $region18: #{feed_forward.1} parent=1 // pred_check
      _
    $region19: #{feed_forward.1} parent=1 // pred_check_branch
      %54 = sbr.rel (0) target = $region21
    $region20: #{feed_forward.1} parent=1 // pred_region
      _
    $region21: #{feed_forward.1} parent=1 // pred_fallthru
      _
    // Predicated region
    $region22: #{feed_forward.1} parent=1 // pred_check
      _
    $region23: #{feed_forward.1} parent=1 // pred_check_branch
      %56 = sbr.rel (0) target = $region25
    $region24: #{feed_forward.1} parent=1 // pred_region
      _
    $region25: #{feed_forward.1} parent=1 // pred_fallthru
      _
    // Predicated region
    $region26: #{feed_forward.1} parent=1 // pred_check
      _
    $region27: #{feed_forward.1} parent=1 // pred_check_branch
      %58 = sbr.rel (0) target = $region29
    $region28: #{feed_forward.1} parent=1 // pred_region
      _
    $region29: #{feed_forward.1} parent=1 // pred_fallthru
      _
    // Predicated region
    $region30: #{feed_forward.1} parent=1 // pred_check
      _
    $region31: #{feed_forward.1} parent=1 // pred_check_branch
      %60 = sbr.rel (0) target = $region33
    $region32: #{feed_forward.1} parent=1 // pred_region
      %61 = dma.done [#allocation4], 256
    $region33: #{feed_forward.1} parent=1 // pred_fallthru
      _
    // Predicated region
    $region34: #{feed_forward.1} parent=1 // pred_check
      _
    $region35: #{feed_forward.1} parent=1 // pred_check_branch
      %63 = sbr.rel (0) target = $region37
    $region36: #{feed_forward.1} parent=1 // pred_region
      %64 = dma.done [#allocation7], 2048
    $region37: #{feed_forward.1} parent=1 // pred_fallthru
      _
    // Predicated region
    $region38: #{feed_forward.1} parent=1 // pred_check
      _
    $region39: #{feed_forward.1} parent=1 // pred_check_branch
      %66 = sbr.rel (0) target = $region41
    $region40: #{feed_forward.1} parent=1 // pred_region
      %67 = dma.done [#allocation7], 2048
    $region41: #{feed_forward.1} parent=1 // pred_fallthru
      _
    %v69 = vld [vmem:[#allocation3] sm:$0xff]
    %v70 = vld [vmem:[#allocation3 + $0x8] sm:$0xff]
    %v71 = vpack.c.bf16 %v70, %v69
    %v72 = vld [vmem:[#allocation6] sm:$0xff]
    %v73 = vld [vmem:[#allocation6 + $0x8] sm:$0xff]
    %v74 = vld [vmem:[#allocation6 + $0x10] sm:$0xff]
    %v75 = vld [vmem:[#allocation6 + $0x18] sm:$0xff]
    %v76 = vld [vmem:[#allocation6 + $0x20] sm:$0xff]
    %v77 = vld [vmem:[#allocation6 + $0x28] sm:$0xff]
    %v78 = vld [vmem:[#allocation6 + $0x30] sm:$0xff]
    %v79 = vld [vmem:[#allocation6 + $0x38] sm:$0xff]
    %v80 = vld [vmem:[#allocation6 + $0x40] sm:$0xff]
    %v81 = vld [vmem:[#allocation6 + $0x48] sm:$0xff]
    %v82 = vld [vmem:[#allocation6 + $0x50] sm:$0xff]
    %v83 = vld [vmem:[#allocation6 + $0x58] sm:$0xff]
    %v84 = vld [vmem:[#allocation6 + $0x60] sm:$0xff]
    %v85 = vld [vmem:[#allocation6 + $0x68] sm:$0xff]
    %v86 = vld [vmem:[#allocation6 + $0x70] sm:$0xff]
    %v87 = vld [vmem:[#allocation6 + $0x78] sm:$0xff]
    %v88 = vld [vmem:[%s2] sm:$0x3]
    %v90 = vlaneseq
    %v91 = vshrl.u32 %v90, 7
    %v92 = vsub.s32 0, %v91
    %v93 = vrot.slane %v88, %v92
    %v94 = vlaneseq
    %v95 = vshrl.u32 %v94, 7
    %v96 = vsub.s32 1, %v95
    %v97 = vrot.slane %v88, %v96
    %v116 = vunpack.c.l.b16 %v72
    %v117 = vunpack.c.h.b16 %v72
    %v118 = vunpack.c.l.b16 %v73
    %v119 = vunpack.c.h.b16 %v73
    %v120 = vunpack.c.l.b16 %v74
    %v121 = vunpack.c.h.b16 %v74
    %v122 = vunpack.c.l.b16 %v75
    %v123 = vunpack.c.h.b16 %v75
    %v124 = vunpack.c.l.b16 %v76
    %v125 = vunpack.c.h.b16 %v76
    %v126 = vunpack.c.l.b16 %v77
    %v127 = vunpack.c.h.b16 %v77
    %v128 = vunpack.c.l.b16 %v78
    %v129 = vunpack.c.h.b16 %v78
    %v130 = vunpack.c.l.b16 %v79
    %v131 = vunpack.c.h.b16 %v79
    %v132 = vunpack.c.l.b16 %v80
    %v133 = vunpack.c.h.b16 %v80
    %v134 = vunpack.c.l.b16 %v81
    %v135 = vunpack.c.h.b16 %v81
    %v136 = vunpack.c.l.b16 %v82
    %v137 = vunpack.c.h.b16 %v82
    %v138 = vunpack.c.l.b16 %v83
    %v139 = vunpack.c.h.b16 %v83
    %v140 = vunpack.c.l.b16 %v84
    %v141 = vunpack.c.h.b16 %v84
    %v142 = vunpack.c.l.b16 %v85
    %v143 = vunpack.c.h.b16 %v85
    %v144 = vunpack.c.l.b16 %v86
    %v145 = vunpack.c.h.b16 %v86
    %v146 = vunpack.c.l.b16 %v87
    %v147 = vunpack.c.h.b16 %v87
    %v148 = vpack.c.b16 %v118, %v116
    %v149 = vpack.c.b16 %v119, %v117
    %v150 = vpack.c.b16 %v122, %v120
    %v151 = vpack.c.b16 %v123, %v121
    %v152 = vpack.c.b16 %v126, %v124
    %v153 = vpack.c.b16 %v127, %v125
    %v154 = vpack.c.b16 %v130, %v128
    %v155 = vpack.c.b16 %v131, %v129
    %v156 = vpack.c.b16 %v134, %v132
    %v157 = vpack.c.b16 %v135, %v133
    %v158 = vpack.c.b16 %v138, %v136
    %v159 = vpack.c.b16 %v139, %v137
    %v160 = vpack.c.b16 %v142, %v140
    %v161 = vpack.c.b16 %v143, %v141
    %v162 = vpack.c.b16 %v146, %v144
    %v163 = vpack.c.b16 %v147, %v145
    %180 = vmatprep.subr.bf16.mxu0 %v149
    %181 = vmatpush1.bf16.msra.mxu0 %v148
    %182 = vmatprep.subr.bf16.mxu0 %v151
    %183 = vmatpush1.bf16.msra.mxu0 %v150
    %184 = vmatprep.subr.bf16.mxu0 %v153
    %185 = vmatpush1.bf16.msra.mxu0 %v152
    %186 = vmatprep.subr.bf16.mxu0 %v155
    %187 = vmatpush1.bf16.msra.mxu0 %v154
    %188 = vmatprep.subr.bf16.mxu0 %v157
    %189 = vmatpush1.bf16.msra.mxu0 %v156
    %190 = vmatprep.subr.bf16.mxu0 %v159
    %191 = vmatpush1.bf16.msra.mxu0 %v158
    %192 = vmatprep.subr.bf16.mxu0 %v161
    %193 = vmatpush1.bf16.msra.mxu0 %v160
    %194 = vmatprep.subr.bf16.mxu0 %v163
    %195 = vmatpush1.bf16.msra.mxu0 %v162
    %196 = vmatprep.subr.bf16.mxu0 0
    %197 = vmatpush1.bf16.msra.mxu0 0
    %198 = vmatprep.subr.bf16.mxu0 0
    %199 = vmatpush1.bf16.msra.mxu0 0
    %200 = vmatprep.subr.bf16.mxu0 0
    %201 = vmatpush1.bf16.msra.mxu0 0
    %202 = vmatprep.subr.bf16.mxu0 0
    %203 = vmatpush1.bf16.msra.mxu0 0
    %204 = vmatprep.subr.bf16.mxu0 0
    %205 = vmatpush1.bf16.msra.mxu0 0
    %206 = vmatprep.subr.bf16.mxu0 0
    %207 = vmatpush1.bf16.msra.mxu0 0
    %208 = vmatprep.subr.bf16.mxu0 0
    %209 = vmatpush1.bf16.msra.mxu0 0
    %210 = vmatprep.subr.bf16.mxu0 0
    %211 = vmatpush1.bf16.msra.mxu0 0
    %212 = vmatprep.mubr.bf16.mxu0 0
    %213 = vmatmul.mubr.bf16.gmra.mrb[0].mxu0 %v71
    %v214 = vpop.f32.mrb[0].mxu0
    %v215 = vadd.f32 %v93, %v214
    %v216 = vpop.f32.mrb[0].mxu0
    %v217 = vadd.f32 %v97, %v216
    %v218 = vpop.f32.mrb[0].mxu0
    %v219 = vadd.f32 %v93, %v218
    %v220 = vpop.f32.mrb[0].mxu0
    %v221 = vadd.f32 %v97, %v220
    %222 = vdwg.mxu0
    %v223 = vmax.f32 %v215, 0.0
    %v224 = vmax.f32 %v217, 0.0
    %v225 = vmax.f32 %v219, 0.0
    %v226 = vmax.f32 %v221, 0.0
    %v227 = vpack.c.bf16 %v225, %v223
    %v228 = vpack.c.bf16 %v226, %v224
    %v229 = vld [vmem:[#allocation8] sm:$0xf]
    %v230 = vld [vmem:[#allocation8 + $0x4] sm:$0xf]
    %v231 = vld [vmem:[#allocation8 + $0x8] sm:$0xf]
    %v232 = vld [vmem:[#allocation8 + $0xc] sm:$0xf]
    %v233 = vld [vmem:[#allocation8 + $0x10] sm:$0xf]
    %v234 = vld [vmem:[#allocation8 + $0x14] sm:$0xf]
    %v235 = vld [vmem:[#allocation8 + $0x18] sm:$0xf]
    %v236 = vld [vmem:[#allocation8 + $0x1c] sm:$0xf]
    %v237 = vld [vmem:[#allocation8 + $0x20] sm:$0xf]
    %v238 = vld [vmem:[#allocation8 + $0x24] sm:$0xf]
    %v239 = vld [vmem:[#allocation8 + $0x28] sm:$0xf]
    %v240 = vld [vmem:[#allocation8 + $0x2c] sm:$0xf]
    %v241 = vld [vmem:[#allocation8 + $0x30] sm:$0xf]
    %v242 = vld [vmem:[#allocation8 + $0x34] sm:$0xf]
    %v243 = vld [vmem:[#allocation8 + $0x38] sm:$0xf]
    %v244 = vld [vmem:[#allocation8 + $0x3c] sm:$0xf]
    %v245 = vld [vmem:[#allocation8 + $0x40] sm:$0xf]
    %v246 = vld [vmem:[#allocation8 + $0x44] sm:$0xf]
    %v247 = vld [vmem:[#allocation8 + $0x48] sm:$0xf]
    %v248 = vld [vmem:[#allocation8 + $0x4c] sm:$0xf]
    %v249 = vld [vmem:[#allocation8 + $0x50] sm:$0xf]
    %v250 = vld [vmem:[#allocation8 + $0x54] sm:$0xf]
    %v251 = vld [vmem:[#allocation8 + $0x58] sm:$0xf]
    %v252 = vld [vmem:[#allocation8 + $0x5c] sm:$0xf]
    %v253 = vld [vmem:[#allocation8 + $0x60] sm:$0xf]
    %v254 = vld [vmem:[#allocation8 + $0x64] sm:$0xf]
    %v255 = vld [vmem:[#allocation8 + $0x68] sm:$0xf]
    %v256 = vld [vmem:[#allocation8 + $0x6c] sm:$0xf]
    %v257 = vld [vmem:[#allocation8 + $0x70] sm:$0xf]
    %v258 = vld [vmem:[#allocation8 + $0x74] sm:$0xf]
    %v259 = vld [vmem:[#allocation8 + $0x78] sm:$0xf]
    %v260 = vld [vmem:[#allocation8 + $0x7c] sm:$0xf]
    %v293 = vunpack.c.l.b16 %v229
    %v294 = vunpack.c.l.b16 %v230
    %v295 = vunpack.c.l.b16 %v231
    %v296 = vunpack.c.l.b16 %v232
    %v297 = vunpack.c.l.b16 %v233
    %v298 = vunpack.c.l.b16 %v234
    %v299 = vunpack.c.l.b16 %v235
    %v300 = vunpack.c.l.b16 %v236
    %v301 = vunpack.c.l.b16 %v237
    %v302 = vunpack.c.l.b16 %v238
    %v303 = vunpack.c.l.b16 %v239
    %v304 = vunpack.c.l.b16 %v240
    %v305 = vunpack.c.l.b16 %v241
    %v306 = vunpack.c.l.b16 %v242
    %v307 = vunpack.c.l.b16 %v243
    %v308 = vunpack.c.l.b16 %v244
    %v309 = vunpack.c.l.b16 %v245
    %v310 = vunpack.c.l.b16 %v246
    %v311 = vunpack.c.l.b16 %v247
    %v312 = vunpack.c.l.b16 %v248
    %v313 = vunpack.c.l.b16 %v249
    %v314 = vunpack.c.l.b16 %v250
    %v315 = vunpack.c.l.b16 %v251
    %v316 = vunpack.c.l.b16 %v252
    %v317 = vunpack.c.l.b16 %v253
    %v318 = vunpack.c.l.b16 %v254
    %v319 = vunpack.c.l.b16 %v255
    %v320 = vunpack.c.l.b16 %v256
    %v321 = vunpack.c.l.b16 %v257
    %v322 = vunpack.c.l.b16 %v258
    %v323 = vunpack.c.l.b16 %v259
    %v324 = vunpack.c.l.b16 %v260
    %v325 = vpack.c.b16 %v294, %v293
    %v326 = vpack.c.b16 %v296, %v295
    %v327 = vpack.c.b16 %v298, %v297
    %v328 = vpack.c.b16 %v300, %v299
    %v329 = vpack.c.b16 %v302, %v301
    %v330 = vpack.c.b16 %v304, %v303
    %v331 = vpack.c.b16 %v306, %v305
    %v332 = vpack.c.b16 %v308, %v307
    %v333 = vpack.c.b16 %v310, %v309
    %v334 = vpack.c.b16 %v312, %v311
    %v335 = vpack.c.b16 %v314, %v313
    %v336 = vpack.c.b16 %v316, %v315
    %v337 = vpack.c.b16 %v318, %v317
    %v338 = vpack.c.b16 %v320, %v319
    %v339 = vpack.c.b16 %v322, %v321
    %v340 = vpack.c.b16 %v324, %v323
    %357 = vmatprep.subr.bf16.mxu0 0
    %358 = vmatpush1.bf16.msra.mxu0 %v325
    %359 = vmatprep.subr.bf16.mxu0 0
    %360 = vmatpush1.bf16.msra.mxu0 %v326
    %361 = vmatprep.subr.bf16.mxu0 0
    %362 = vmatpush1.bf16.msra.mxu0 %v327
    %363 = vmatprep.subr.bf16.mxu0 0
    %364 = vmatpush1.bf16.msra.mxu0 %v328
    %365 = vmatprep.subr.bf16.mxu0 0
    %366 = vmatpush1.bf16.msra.mxu0 %v329
    %367 = vmatprep.subr.bf16.mxu0 0
    %368 = vmatpush1.bf16.msra.mxu0 %v330
    %369 = vmatprep.subr.bf16.mxu0 0
    %370 = vmatpush1.bf16.msra.mxu0 %v331
    %371 = vmatprep.subr.bf16.mxu0 0
    %372 = vmatpush1.bf16.msra.mxu0 %v332
    %373 = vmatprep.subr.bf16.mxu0 0
    %374 = vmatpush1.bf16.msra.mxu0 %v333
    %375 = vmatprep.subr.bf16.mxu0 0
    %376 = vmatpush1.bf16.msra.mxu0 %v334
    %377 = vmatprep.subr.bf16.mxu0 0
    %378 = vmatpush1.bf16.msra.mxu0 %v335
    %379 = vmatprep.subr.bf16.mxu0 0
    %380 = vmatpush1.bf16.msra.mxu0 %v336
    %381 = vmatprep.subr.bf16.mxu0 0
    %382 = vmatpush1.bf16.msra.mxu0 %v337
    %383 = vmatprep.subr.bf16.mxu0 0
    %384 = vmatpush1.bf16.msra.mxu0 %v338
    %385 = vmatprep.subr.bf16.mxu0 0
    %386 = vmatpush1.bf16.msra.mxu0 %v339
    %387 = vmatprep.subr.bf16.mxu0 0
    %388 = vmatpush1.bf16.msra.mxu0 %v340
    %389 = vmatprep.mubr.bf16.mxu0 %v228
    %390 = vmatmul.mubr.bf16.gmra.mrb[0].mxu0 %v227
    %v391 = vpop.f32.mrb[0].mxu0
    %v392 = vadd.f32 0.0, %v391
    %v393 = vpop.f32.mrb[0].mxu0
    %v394 = vpop.f32.mrb[0].mxu0
    %v395 = vadd.f32 0.0, %v394
    %v396 = vpop.f32.mrb[0].mxu0
    %397 = vdwg.mxu0
    %p398 = scmp.eq.s32.totalorder 0, 0
    // Predicated region
    $region42: #{feed_forward.1} parent=1 // pred_check
      %p399 = pneg %p398
    $region43: #{feed_forward.1} parent=1 // pred_check_branch
      %401 = sbr.rel (%p399) target = $region45
    $region44: #{feed_forward.1} parent=1 // pred_region
      %402 = vst [vmem:[#allocation2] sm:$0xff] %v392
      %403 = vst [vmem:[#allocation2 + $0x8] sm:$0xff] %v395
    $region45: #{feed_forward.1} parent=1 // pred_fallthru
      _
    %p404 = scmp.ne.s32.totalorder 0, 0
    // Predicated region
    $region46: #{feed_forward.1} parent=1 // pred_check
      %p405 = pneg %p404
    $region47: #{feed_forward.1} parent=1 // pred_check_branch
      %407 = sbr.rel (%p405) target = $region49
    $region48: #{feed_forward.1} parent=1 // pred_region
      %v408 = vld [vmem:[#allocation2] sm:$0xff]
      %v409 = vld [vmem:[#allocation2 + $0x8] sm:$0xff]
      %v410 = vadd.f32 %v408, %v392
      %v411 = vadd.f32 %v409, %v395
      %412 = vst [vmem:[#allocation2] sm:$0xff] %v410
      %413 = vst [vmem:[#allocation2 + $0x8] sm:$0xff] %v411
    $region49: #{feed_forward.1} parent=1 // pred_fallthru
      _
    // Predicated region
    $region50: #{feed_forward.1} parent=1 // pred_check
      %p414 = pneg %p398
    $region51: #{feed_forward.1} parent=1 // pred_check_branch
      %416 = sbr.rel (%p414) target = $region53
    $region52: #{feed_forward.1} parent=1 // pred_region
      %v417 = vld [vmem:[#allocation2] sm:$0xff]
      %v418 = vld [vmem:[#allocation2 + $0x8] sm:$0xff]
      %v419 = vld [vmem:[%s4] sm:$0x1]
      %v421 = vlaneseq
      %v422 = vshrl.u32 %v421, 7
      %v423 = vsub.s32 0, %v422
      %v424 = vrot.slane %v419, %v423
      %v426 = vadd.f32 %v417, %v424
      %v427 = vadd.f32 %v418, %v424
      %v428 = vadd.f32 %v426, %v69
      %v429 = vadd.f32 %v427, %v70
      %430 = vadd.xlane.f32.xlu0 %v428
      %v431 = vpop.xlane.xlu0 %430
      %432 = vadd.xlane.f32.xlu0 %v429
      %v433 = vpop.xlane.xlu0 %432
      %v434 = vrcp.pop 128.0
      %v435 = vmul.f32 %v431, %v434
      %v436 = vmul.f32 %v433, %v434
      %v437 = vsub.f32 %v428, %v435
      %v438 = vsub.f32 %v429, %v436
      %v439 = vmul.f32 %v437, %v437
      %v440 = vmul.f32 %v438, %v438
      %441 = vadd.xlane.f32.xlu0 %v439
      %v442 = vpop.xlane.xlu0 %441
      %443 = vadd.xlane.f32.xlu0 %v440
      %v444 = vpop.xlane.xlu0 %443
      %v445 = vmul.f32 %v442, %v434
      %v446 = vmul.f32 %v444, %v434
      %v447 = vadd.f32 %v445, 1e-05
      %v448 = vadd.f32 %v446, 1e-05
      %v449 = vrsqrt.pop %v447
      %v450 = vrsqrt.pop %v448
      %v451 = vmul.f32 %v437, %v449
      %v452 = vmul.f32 %v438, %v450
      %v453 = vld [vmem:[%s5] sm:$0x1]
      %v455 = vlaneseq
      %v456 = vshrl.u32 %v455, 7
      %v457 = vsub.s32 0, %v456
      %v458 = vrot.slane %v453, %v457
      %v460 = vmul.f32 %v451, %v458
      %v461 = vmul.f32 %v452, %v458
      %v462 = vld [vmem:[%s6] sm:$0x1]
      %v464 = vlaneseq
      %v465 = vshrl.u32 %v464, 7
      %v466 = vsub.s32 0, %v465
      %v467 = vrot.slane %v462, %v466
      %v469 = vadd.f32 %v460, %v467
      %v470 = vadd.f32 %v461, %v467
      %471 = vst [vmem:[#allocation9] sm:$0xff] %v469
      %472 = vst [vmem:[#allocation9 + $0x8] sm:$0xff] %v470
    $region53: #{feed_forward.1} parent=1 // pred_fallthru
      _
    // Predicated region
    $region54: #{feed_forward.1} parent=1 // pred_check
      _
    $region55: #{feed_forward.1} parent=1 // pred_check_branch
      %474 = sbr.rel (0) target = $region57
    $region56: #{feed_forward.1} parent=1 // pred_region
      %s476 = ssub.s32 256, 256
      %477 = vsyncadd [#allocation5], %s476
      %s478 = sshll.u32 [#allocation9], 4
      %s479 = int_to_ptr.vmem [resolvable:$true] %s478
      %484 = dma.vmem_to_hbm [thread:$0]  %s479, 256, %s7, [#allocation5], 128, 128, 8
    $region57: #{feed_forward.1} parent=1 // pred_fallthru
      _
    // Predicated region
    $region58: #{feed_forward.1} parent=1 // pred_check
      _
    $region59: #{feed_forward.1} parent=1 // pred_check_branch
      %486 = sbr.rel (0) target = $region61
    $region60: #{feed_forward.1} parent=1 // pred_region
      %487 = dma.done [#allocation5], 256
    $region61: #{feed_forward.1} parent=1 // pred_fallthru
      _
    %488 = vsyncpa [#allocation4], 1
    %489 = vsyncpa [#allocation7], 1
    %490 = vsyncpa [#allocation5], 1

</llo_original>
